<compile_context>
chip_gen: v6e
topology: v6e:2x2x1
jax: 0.10.0
libtpu: 0.0.40
codegen_flags: <defaults>
</compile_context>

<pallas_src>
import jax
import jax.numpy as jnp
from jax.experimental import pallas as pl
from jax.experimental.pallas import tpu as pltpu

_LANES = 128  # lane width / alignment for the batch (lane) dimension


def generator_kernel(x_ref, w1_ref, b1_ref, w2_ref, b2_ref, w3_ref, b3_ref, o_ref):
    # Feature-major: activations are (features, TB); TB sits on the lane dim so every
    # load/store and the output DMA are lane-dense.  3 small MXU matmuls (f32 acc),
    # bias adds on the VPU, tanh on the EUP.
    x = x_ref[...]                                                                        # (5,  TB)
    h1 = jnp.tanh(jnp.dot(w1_ref[...], x, preferred_element_type=jnp.float32) + b1_ref[...])   # (50, TB)
    h2 = jnp.tanh(jnp.dot(w2_ref[...], h1, preferred_element_type=jnp.float32) + b2_ref[...])  # (50, TB)
    o = jnp.tanh(jnp.dot(w3_ref[...], h2, preferred_element_type=jnp.float32) + b3_ref[...])   # (out, TB)
    o_ref[...] = o.astype(o_ref.dtype)


def init_linear_params(key, in_features, out_features):
    """PyTorch nn.Linear default init U(-1/sqrt(in), 1/sqrt(in)); weight kept in
    PyTorch-native (out, in) layout, bias as (out, 1) (kernel layout)."""
    kw, kb = jax.random.split(key)
    bound = 1.0 / jnp.sqrt(jnp.float32(in_features))
    w = jax.random.uniform(kw, (out_features, in_features), jnp.float32, -bound, bound)
    b = jax.random.uniform(kb, (out_features, 1), jnp.float32, -bound, bound)
    return w, b


def init_generator_params(key, output_size):
    k1, k2, k3 = jax.random.split(key, 3)
    return (
        init_linear_params(k1, 5, 50),
        init_linear_params(k2, 50, 50),
        init_linear_params(k3, 50, output_size),
    )


def _pick_batch_tile(batch, tb_max):
    """Choose (tb, n_tiles) with tb*n_tiles >= batch.

    tb is a multiple of 128 (lane-dense blocks) except for small/unaligned batches that
    fit in a single full-extent block.  For 128-aligned batches tb divides the batch
    exactly (no padding) and, when batch >= 256, n_tiles >= 2 so both v7x TensorCores
    get work via the "parallel" grid axis.
    """
    tb_max = max(_LANES, (tb_max // _LANES) * _LANES)
    if batch % _LANES == 0:
        cap = min(tb_max, batch)
        if batch >= 2 * _LANES:
            cap = min(cap, max(_LANES, (batch // 2 // _LANES) * _LANES))
        tb = cap
        while batch % tb != 0:
            tb -= _LANES
        return tb, batch // tb
    if batch <= tb_max:
        return batch, 1  # single full-extent block; no padding needed
    return tb_max, -(-batch // tb_max)


def generator_net_feature_major(xt, params, *, tb_max=8192):
    """Feature-major forward: xt is (5, batch) -> (out_features, batch)."""
    (w1, b1), (w2, b2), (w3, b3) = params
    in_features, batch = xt.shape
    out_features = w3.shape[0]

    tb, n_tiles = _pick_batch_tile(batch, tb_max)
    padded = tb * n_tiles
    if padded != batch:
        # Only for large, non-128-aligned batches.  Padding is over the 20 B/row input
        # stream; the output slice below fuses into the caller's transpose, so neither
        # adds a full extra pass over the 128 B/row output.
        xt = jnp.pad(xt, ((0, 0), (0, padded - batch)))

    def full_spec(shape):
        # Weights/biases: full array, same block every grid step -> VMEM-resident.
        return pl.BlockSpec(shape, lambda i: (0, 0))

    param_bytes = 4 * sum(int(a.size) for layer in params for a in layer)
    cost = pl.CostEstimate(
        flops=2 * padded * (5 * 50 + 50 * 50 + 50 * out_features),
        transcendentals=padded * (50 + 50 + out_features),
        bytes_accessed=padded * (in_features + out_features) * 4 + param_bytes,
    )

    out_t = pl.pallas_call(
        generator_kernel,
        out_shape=jax.ShapeDtypeStruct((out_features, padded), jnp.float32),
        grid=(n_tiles,),
        in_specs=[
            pl.BlockSpec((in_features, tb), lambda i: (0, i)),  # x^T: batch tiled on lanes
            full_spec(w1.shape), full_spec(b1.shape),
            full_spec(w2.shape), full_spec(b2.shape),
            full_spec(w3.shape), full_spec(b3.shape),
        ],
        out_specs=pl.BlockSpec((out_features, tb), lambda i: (0, i)),  # lane-dense output
        compiler_params=pltpu.CompilerParams(
            # Batch tiles are independent -> shard across both TCs on v7x
            # (no measurable effect on single-TC v5e/v6e, harmless there).
            dimension_semantics=("parallel",),
        ),
        cost_estimate=cost,
    )(xt, w1, b1, w2, b2, w3, b3)

    return out_t[:, :batch] if padded != batch else out_t


def generator_net(x, params, *, tb_max=8192):
    """Drop-in forward matching the nn.Module: x (batch, 5) -> (batch, out_features)."""
    out_t = generator_net_feature_major(x.T, params, tb_max=tb_max)
    return out_t.T


def generator_net_ref(x, params):
    """Pure-JAX reference in PyTorch param layout (W: (out, in), b: (out, 1))."""
    (w1, b1), (w2, b2), (w3, b3) = params
    h = jnp.tanh(x @ w1.T + b1[:, 0])
    h = jnp.tanh(h @ w2.T + b2[:, 0])
    return jnp.tanh(h @ w3.T + b3[:, 0])


if __name__ == "__main__":
    key = jax.random.PRNGKey(0)
    k_p, k1, k2, k3 = jax.random.split(key, 4)

    output_size = 32  # GeneratorNet(output_size=32)
    params = init_generator_params(k_p, output_size)

    # 1) Small unaligned batch -> single full-extent block, no padding.
    x = jax.random.normal(k1, (8, 5), jnp.float32)
    out = jax.block_until_ready(generator_net(x, params))
    ref = generator_net_ref(x, params)
    assert out.shape == (8, output_size)
    assert jnp.allclose(out, ref, atol=1e-5, rtol=1e-5), "mismatch (small batch)"

    # 2) 128-aligned batch -> tb=128, 2 tiles (megacore-friendly), lane-dense, no padding.
    x2 = jax.random.normal(k2, (256, 5), jnp.float32)
    out2 = jax.block_until_ready(generator_net(x2, params))
    ref2 = generator_net_ref(x2, params)
    assert out2.shape == (256, output_size)
    assert jnp.allclose(out2, ref2, atol=1e-5, rtol=1e-5), "mismatch (aligned batch)"

    # 3) Large-unaligned path (forced small tb_max): padding + ragged output slice.
    x3 = jax.random.normal(k3, (300, 5), jnp.float32)
    out3 = jax.block_until_ready(generator_net(x3, params, tb_max=128))
    ref3 = generator_net_ref(x3, params)
    assert out3.shape == (300, output_size)
    assert jnp.allclose(out3, ref3, atol=1e-5, rtol=1e-5), "mismatch (padded batch)"

    print("KERNEL_OK")
</pallas_src>

<mosaic_0001>
module attributes {stable_mosaic.version = 11 : i64} {
  func.func @generator_kernel(%arg0: i32, %arg1: memref<5x8xf32, #tpu.memory_space<vmem>>, %arg2: memref<50x5xf32, #tpu.memory_space<vmem>>, %arg3: memref<50x1xf32, #tpu.memory_space<vmem>>, %arg4: memref<50x50xf32, #tpu.memory_space<vmem>>, %arg5: memref<50x1xf32, #tpu.memory_space<vmem>>, %arg6: memref<32x50xf32, #tpu.memory_space<vmem>>, %arg7: memref<32x1xf32, #tpu.memory_space<vmem>>, %arg8: memref<32x8xf32, #tpu.memory_space<vmem>>) attributes {dimension_semantics = [#tpu.dimension_semantics<parallel>], iteration_bounds = array<i64: 1>, scalar_prefetch = 0 : i64, scratch_operands = 0 : i64, tpu.core_type = #tpu.core_type<tc>, window_params = [{transform_indices = @transform_0, window_bounds = array<i64: 5, 8>}, {pipeline_mode = #tpu.pipeline_mode<synchronous>, transform_indices = @transform_1, window_bounds = array<i64: 50, 5>}, {pipeline_mode = #tpu.pipeline_mode<synchronous>, transform_indices = @transform_2, window_bounds = array<i64: 50, 1>}, {pipeline_mode = #tpu.pipeline_mode<synchronous>, transform_indices = @transform_3, window_bounds = array<i64: 50, 50>}, {pipeline_mode = #tpu.pipeline_mode<synchronous>, transform_indices = @transform_4, window_bounds = array<i64: 50, 1>}, {pipeline_mode = #tpu.pipeline_mode<synchronous>, transform_indices = @transform_5, window_bounds = array<i64: 32, 50>}, {pipeline_mode = #tpu.pipeline_mode<synchronous>, transform_indices = @transform_6, window_bounds = array<i64: 32, 1>}, {transform_indices = @transform_7, window_bounds = array<i64: 32, 8>}]} {
    %c0 = arith.constant 0 : index
    %c0_0 = arith.constant 0 : index
    %0 = vector.load %arg1[%c0, %c0_0] : memref<5x8xf32, #tpu.memory_space<vmem>>, vector<5x8xf32>
    %c0_1 = arith.constant 0 : index
    %c0_2 = arith.constant 0 : index
    %1 = vector.load %arg2[%c0_1, %c0_2] : memref<50x5xf32, #tpu.memory_space<vmem>>, vector<50x5xf32>
    %cst = arith.constant dense<0.000000e+00> : vector<50x8xf32>
    %2 = tpu.matmul %1, %0, %cst {dimension_numbers = #tpu.dot_dimension_numbers<[1], [0], [0], [1], [0, 0, 1, 1], [], []>} : vector<50x5xf32>, vector<5x8xf32>, vector<50x8xf32> -> vector<50x8xf32>
    %c0_3 = arith.constant 0 : index
    %c0_4 = arith.constant 0 : index
    %3 = vector.load %arg3[%c0_3, %c0_4] : memref<50x1xf32, #tpu.memory_space<vmem>>, vector<50x1xf32>
    %4 = vector.broadcast %3 : vector<50x1xf32> to vector<50x8xf32>
    %5 = arith.addf %2, %4 : vector<50x8xf32>
    %6 = math.tanh %5 : vector<50x8xf32>
    %c0_5 = arith.constant 0 : index
    %c0_6 = arith.constant 0 : index
    %7 = vector.load %arg4[%c0_5, %c0_6] : memref<50x50xf32, #tpu.memory_space<vmem>>, vector<50x50xf32>
    %cst_7 = arith.constant dense<0.000000e+00> : vector<50x8xf32>
    %8 = tpu.matmul %7, %6, %cst_7 {dimension_numbers = #tpu.dot_dimension_numbers<[1], [0], [0], [1], [0, 0, 1, 1], [], []>} : vector<50x50xf32>, vector<50x8xf32>, vector<50x8xf32> -> vector<50x8xf32>
    %c0_8 = arith.constant 0 : index
    %c0_9 = arith.constant 0 : index
    %9 = vector.load %arg5[%c0_8, %c0_9] : memref<50x1xf32, #tpu.memory_space<vmem>>, vector<50x1xf32>
    %10 = vector.broadcast %9 : vector<50x1xf32> to vector<50x8xf32>
    %11 = arith.addf %8, %10 : vector<50x8xf32>
    %12 = math.tanh %11 : vector<50x8xf32>
    %c0_10 = arith.constant 0 : index
    %c0_11 = arith.constant 0 : index
    %13 = vector.load %arg6[%c0_10, %c0_11] : memref<32x50xf32, #tpu.memory_space<vmem>>, vector<32x50xf32>
    %cst_12 = arith.constant dense<0.000000e+00> : vector<32x8xf32>
    %14 = tpu.matmul %13, %12, %cst_12 {dimension_numbers = #tpu.dot_dimension_numbers<[1], [0], [0], [1], [0, 0, 1, 1], [], []>} : vector<32x50xf32>, vector<50x8xf32>, vector<32x8xf32> -> vector<32x8xf32>
    %c0_13 = arith.constant 0 : index
    %c0_14 = arith.constant 0 : index
    %15 = vector.load %arg7[%c0_13, %c0_14] : memref<32x1xf32, #tpu.memory_space<vmem>>, vector<32x1xf32>
    %16 = vector.broadcast %15 : vector<32x1xf32> to vector<32x8xf32>
    %17 = arith.addf %14, %16 : vector<32x8xf32>
    %18 = math.tanh %17 : vector<32x8xf32>
    %c0_15 = arith.constant 0 : index
    %c0_16 = arith.constant 0 : index
    %19 = vector.load %arg8[%c0_15, %c0_16] : memref<32x8xf32, #tpu.memory_space<vmem>>, vector<32x8xf32>
    tpu.vector_store %arg8[%c0_15, %c0_16], %18 {strides = array<i32>} : memref<32x8xf32, #tpu.memory_space<vmem>>, vector<32x8xf32>,
    return
  }
  func.func @transform_0(%arg0: i32) -> (i32, i32) {
    %c0_i32 = arith.constant 0 : i32
    %c0_i32_0 = arith.constant 0 : i32
    return %c0_i32, %arg0 : i32, i32
  }
  func.func @transform_1(%arg0: i32) -> (i32, i32) {
    %c0_i32 = arith.constant 0 : i32
    %c0_i32_0 = arith.constant 0 : i32
    %c0_i32_1 = arith.constant 0 : i32
    return %c0_i32, %c0_i32_0 : i32, i32
  }
  func.func @transform_2(%arg0: i32) -> (i32, i32) {
    %c0_i32 = arith.constant 0 : i32
    %c0_i32_0 = arith.constant 0 : i32
    %c0_i32_1 = arith.constant 0 : i32
    return %c0_i32, %c0_i32_0 : i32, i32
  }
  func.func @transform_3(%arg0: i32) -> (i32, i32) {
    %c0_i32 = arith.constant 0 : i32
    %c0_i32_0 = arith.constant 0 : i32
    %c0_i32_1 = arith.constant 0 : i32
    return %c0_i32, %c0_i32_0 : i32, i32
  }
  func.func @transform_4(%arg0: i32) -> (i32, i32) {
    %c0_i32 = arith.constant 0 : i32
    %c0_i32_0 = arith.constant 0 : i32
    %c0_i32_1 = arith.constant 0 : i32
    return %c0_i32, %c0_i32_0 : i32, i32
  }
  func.func @transform_5(%arg0: i32) -> (i32, i32) {
    %c0_i32 = arith.constant 0 : i32
    %c0_i32_0 = arith.constant 0 : i32
    %c0_i32_1 = arith.constant 0 : i32
    return %c0_i32, %c0_i32_0 : i32, i32
  }
  func.func @transform_6(%arg0: i32) -> (i32, i32) {
    %c0_i32 = arith.constant 0 : i32
    %c0_i32_0 = arith.constant 0 : i32
    %c0_i32_1 = arith.constant 0 : i32
    return %c0_i32, %c0_i32_0 : i32, i32
  }
  func.func @transform_7(%arg0: i32) -> (i32, i32) {
    %c0_i32 = arith.constant 0 : i32
    %c0_i32_0 = arith.constant 0 : i32
    return %c0_i32, %arg0 : i32, i32
  }
}

</mosaic_0001>

<llo_original>
// kernel: tpu_custom_call.1
$region0: #{tpu_custom_call.1}
  #allocation0 [shape = 'u32[]', space=smem, size = 0x4, offset = 0x4, fixed_abs, tag = 'smem constant byte address 0x4 - core index']
  #allocation1 [shape = 'u32[144,128]{1,0:T(1,128)}', space=vmem, size = 0x12000, scoped, tag = 'internal scratch']
  %s0 = inlined_call_operand.vmem [shape: f32[5,8], index: 0, kind: input, shape index: {}]
  %s1 = inlined_call_operand.vmem [shape: f32[50,5], index: 1, kind: input, shape index: {}]
  %s2 = inlined_call_operand.vmem [shape: f32[50,1], index: 2, kind: input, shape index: {}]
  %s3 = inlined_call_operand.vmem [shape: f32[50,50], index: 3, kind: input, shape index: {}]
  %s4 = inlined_call_operand.vmem [shape: f32[50,1], index: 4, kind: input, shape index: {}]
  %s5 = inlined_call_operand.vmem [shape: f32[32,50], index: 5, kind: input, shape index: {}]
  %s6 = inlined_call_operand.vmem [shape: f32[32,1], index: 6, kind: input, shape index: {}]
  %s7 = inlined_call_operand.vmem [shape: f32[32,8], index: 7, kind: output, shape index: {}]
  %s8 = sld [smem:[#allocation0]]
  $region38: #{tpu_custom_call.1} parent=0
    _
  %s10 = ssub.s32 1, %s8
  %s11 = scalar_select 0, %s10, %s8
  // Predicated region
  $region2: #{tpu_custom_call.1} parent=0 // pred_check
    _
  $region3: #{tpu_custom_call.1} parent=0 // pred_check_branch
    %13 = sbr.rel (0) target = $region5
  $region4: #{tpu_custom_call.1} parent=0 // pred_region
    _
  $region5: #{tpu_custom_call.1} parent=0 // pred_fallthru
    _
  // Predicated region
  $region6: #{tpu_custom_call.1} parent=0 // pred_check
    _
  $region7: #{tpu_custom_call.1} parent=0 // pred_check_branch
    %15 = sbr.rel (0) target = $region9
  $region8: #{tpu_custom_call.1} parent=0 // pred_region
    _
  $region9: #{tpu_custom_call.1} parent=0 // pred_fallthru
    _
  // Predicated region
  $region10: #{tpu_custom_call.1} parent=0 // pred_check
    _
  $region11: #{tpu_custom_call.1} parent=0 // pred_check_branch
    %17 = sbr.rel (0) target = $region13
  $region12: #{tpu_custom_call.1} parent=0 // pred_region
    _
  $region13: #{tpu_custom_call.1} parent=0 // pred_fallthru
    _
  // Predicated region
  $region14: #{tpu_custom_call.1} parent=0 // pred_check
    _
  $region15: #{tpu_custom_call.1} parent=0 // pred_check_branch
    %19 = sbr.rel (0) target = $region17
  $region16: #{tpu_custom_call.1} parent=0 // pred_region
    _
  $region17: #{tpu_custom_call.1} parent=0 // pred_fallthru
    _
  // Predicated region
  $region18: #{tpu_custom_call.1} parent=0 // pred_check
    _
  $region19: #{tpu_custom_call.1} parent=0 // pred_check_branch
    %21 = sbr.rel (0) target = $region21
  $region20: #{tpu_custom_call.1} parent=0 // pred_region
    _
  $region21: #{tpu_custom_call.1} parent=0 // pred_fallthru
    _
  // Predicated region
  $region22: #{tpu_custom_call.1} parent=0 // pred_check
    _
  $region23: #{tpu_custom_call.1} parent=0 // pred_check_branch
    %23 = sbr.rel (0) target = $region25
  $region24: #{tpu_custom_call.1} parent=0 // pred_region
    _
  $region25: #{tpu_custom_call.1} parent=0 // pred_fallthru
    _
  // Predicated region
  $region26: #{tpu_custom_call.1} parent=0 // pred_check
    _
  $region27: #{tpu_custom_call.1} parent=0 // pred_check_branch
    %25 = sbr.rel (0) target = $region29
  $region28: #{tpu_custom_call.1} parent=0 // pred_region
    _
  $region29: #{tpu_custom_call.1} parent=0 // pred_fallthru
    _
  %v26 = vld [vmem:[%s0] sm:$0x1f]
  %v27 = vld [vmem:[%s1] sm:$0xff]
  %v28 = vld [vmem:[%s1 + $0x8] sm:$0xff]
  %v29 = vld [vmem:[%s1 + $0x10] sm:$0xff]
  %v30 = vld [vmem:[%s1 + $0x18] sm:$0xff]
  %v31 = vld [vmem:[%s1 + $0x20] sm:$0xff]
  %v32 = vld [vmem:[%s1 + $0x28] sm:$0xff]
  %v33 = vld [vmem:[%s1 + $0x30] sm:$0x3]
  %v34 = vld [vmem:[%s2] sm:$0xff]
  %v35 = vld [vmem:[%s2 + $0x8] sm:$0xff]
  %v36 = vld [vmem:[%s2 + $0x10] sm:$0xff]
  %v37 = vld [vmem:[%s2 + $0x18] sm:$0xff]
  %v38 = vld [vmem:[%s2 + $0x20] sm:$0xff]
  %v39 = vld [vmem:[%s2 + $0x28] sm:$0xff]
  %v40 = vld [vmem:[%s2 + $0x30] sm:$0x3]
  %42 = vset.pattern.permute.xlu0 0
  %43 = vperm.xlu0 %42, %v34
  %v44 = vpop.permute.xlu0 %43
  %47 = vset.pattern.permute.xlu0 0
  %48 = vperm.xlu0 %47, %v35
  %v49 = vpop.permute.xlu0 %48
  %52 = vset.pattern.permute.xlu0 0
  %53 = vperm.xlu0 %52, %v36
  %v54 = vpop.permute.xlu0 %53
  %57 = vset.pattern.permute.xlu0 0
  %58 = vperm.xlu0 %57, %v37
  %v59 = vpop.permute.xlu0 %58
  %62 = vset.pattern.permute.xlu0 0
  %63 = vperm.xlu0 %62, %v38
  %v64 = vpop.permute.xlu0 %63
  %67 = vset.pattern.permute.xlu0 0
  %68 = vperm.xlu0 %67, %v39
  %v69 = vpop.permute.xlu0 %68
  %72 = vset.pattern.permute.xlu0 0
  %73 = vperm.xlu0 %72, %v40
  %v74 = vpop.permute.xlu0 %73
  %vm76 = vcmask 39936
  %v78 = vsel %vm76, %v27, 0
  %v81 = vsel %vm76, %v28, 0
  %v84 = vsel %vm76, %v29, 0
  %v87 = vsel %vm76, %v30, 0
  %v90 = vsel %vm76, %v31, 0
  %v93 = vsel %vm76, %v32, 0
  %v96 = vsel %vm76, %v33, 0
  %vm98 = vcmask 1044480
  %v100 = vsel %vm98, %v26, 0
  %102 = vmatprep.subr.mxu0 0.0
  %103 = vmatpush1.msra.mxu0 0.0
  %104 = vmatprep.subr.mxu0 0.0
  %105 = vmatpush1.msra.mxu0 0.0
  %106 = vmatprep.subr.mxu0 0.0
  %107 = vmatpush1.msra.mxu0 0.0
  %108 = vmatprep.subr.mxu0 0.0
  %109 = vmatpush1.msra.mxu0 0.0
  %110 = vmatprep.subr.mxu0 0.0
  %111 = vmatpush1.msra.mxu0 0.0
  %112 = vmatprep.subr.mxu0 0.0
  %113 = vmatpush1.msra.mxu0 0.0
  %114 = vmatprep.subr.mxu0 0.0
  %115 = vmatpush1.msra.mxu0 0.0
  %116 = vmatprep.subr.mxu0 0.0
  %117 = vmatpush1.msra.mxu0 0.0
  %118 = vmatprep.subr.mxu0 0.0
  %119 = vmatpush1.msra.mxu0 0.0
  %120 = vmatprep.subr.mxu0 0.0
  %121 = vmatpush1.msra.mxu0 0.0
  %122 = vmatprep.subr.mxu0 0.0
  %123 = vmatpush1.msra.mxu0 0.0
  %124 = vmatprep.subr.mxu0 0.0
  %125 = vmatpush1.msra.mxu0 0.0
  %126 = vmatprep.subr.mxu0 0.0
  %127 = vmatpush1.msra.mxu0 0.0
  %128 = vmatprep.subr.mxu0 0.0
  %129 = vmatpush1.msra.mxu0 0.0
  %130 = vmatprep.subr.mxu0 0.0
  %131 = vmatpush1.msra.mxu0 0.0
  %132 = vmatprep.subr.mxu0 0.0
  %133 = vmatpush1.msra.mxu0 %v100
  %134 = vmatprep.subr.mxu0 0.0
  %135 = vmatpush2.msra.mxu0 0.0
  %136 = vmatprep.subr.mxu0 0.0
  %137 = vmatpush2.msra.mxu0 0.0
  %138 = vmatprep.subr.mxu0 0.0
  %139 = vmatpush2.msra.mxu0 0.0
  %140 = vmatprep.subr.mxu0 0.0
  %141 = vmatpush2.msra.mxu0 0.0
  %142 = vmatprep.subr.mxu0 0.0
  %143 = vmatpush2.msra.mxu0 0.0
  %144 = vmatprep.subr.mxu0 0.0
  %145 = vmatpush2.msra.mxu0 0.0
  %146 = vmatprep.subr.mxu0 0.0
  %147 = vmatpush2.msra.mxu0 0.0
  %148 = vmatprep.subr.mxu0 0.0
  %149 = vmatpush2.msra.mxu0 0.0
  %150 = vmatprep.subr.mxu0 0.0
  %151 = vmatpush2.msra.mxu0 0.0
  %152 = vmatprep.subr.mxu0 0.0
  %153 = vmatpush2.msra.mxu0 0.0
  %154 = vmatprep.subr.mxu0 0.0
  %155 = vmatpush2.msra.mxu0 0.0
  %156 = vmatprep.subr.mxu0 0.0
  %157 = vmatpush2.msra.mxu0 0.0
  %158 = vmatprep.subr.mxu0 0.0
  %159 = vmatpush2.msra.mxu0 0.0
  %160 = vmatprep.subr.mxu0 0.0
  %161 = vmatpush2.msra.mxu0 0.0
  %162 = vmatprep.subr.mxu0 0.0
  %163 = vmatpush2.msra.mxu0 0.0
  %164 = vmatprep.subr.mxu0 0.0
  %165 = vmatpush2.msra.mxu0 0.0
  %166 = vmatprep.mubr.f32.mxu0 0.0
  %167 = vmatmul.mubr.f32.gmra.mxu0 %v78
  %v168 = vpop.f32.mrf.mxu0
  %v169 = vadd.f32 %v44, %v168
  %v170 = vpop.f32.mrf.mxu0
  %171 = vmatprep.mubr.f32.mxu0 0.0
  %172 = vmatmul.mubr.f32.gmra.mxu0 %v81
  %v173 = vpop.f32.mrf.mxu0
  %v174 = vadd.f32 %v49, %v173
  %v175 = vpop.f32.mrf.mxu0
  %176 = vmatprep.mubr.f32.mxu0 0.0
  %177 = vmatmul.mubr.f32.gmra.mxu0 %v84
  %v178 = vpop.f32.mrf.mxu0
  %v179 = vadd.f32 %v54, %v178
  %v180 = vpop.f32.mrf.mxu0
  %181 = vmatprep.mubr.f32.mxu0 0.0
  %182 = vmatmul.mubr.f32.gmra.mxu0 %v87
  %v183 = vpop.f32.mrf.mxu0
  %v184 = vadd.f32 %v59, %v183
  %v185 = vpop.f32.mrf.mxu0
  %186 = vmatprep.mubr.f32.mxu0 0.0
  %187 = vmatmul.mubr.f32.gmra.mxu0 %v90
  %v188 = vpop.f32.mrf.mxu0
  %v189 = vadd.f32 %v64, %v188
  %v190 = vpop.f32.mrf.mxu0
  %191 = vmatprep.mubr.f32.mxu0 0.0
  %192 = vmatmul.mubr.f32.gmra.mxu0 %v93
  %v193 = vpop.f32.mrf.mxu0
  %v194 = vadd.f32 %v69, %v193
  %v195 = vpop.f32.mrf.mxu0
  %196 = vmatprep.mubr.f32.mxu0 0.0
  %197 = vmatmul.mubr.f32.gmra.mxu0 %v96
  %v198 = vpop.f32.mrf.mxu0
  %v199 = vadd.f32 %v74, %v198
  %v200 = vpop.f32.mrf.mxu0
  %201 = vdwg.mxu0
  %v202 = vtanh.pop %v169
  %v203 = vtanh.pop %v174
  %v204 = vtanh.pop %v179
  %v205 = vtanh.pop %v184
  %v206 = vtanh.pop %v189
  %v207 = vtanh.pop %v194
  %v208 = vtanh.pop %v199
  %v209 = vld [vmem:[%s3] sm:$0xff]
  %v210 = vld [vmem:[%s3 + $0x8] sm:$0xff]
  %v211 = vld [vmem:[%s3 + $0x10] sm:$0xff]
  %v212 = vld [vmem:[%s3 + $0x18] sm:$0xff]
  %v213 = vld [vmem:[%s3 + $0x20] sm:$0xff]
  %v214 = vld [vmem:[%s3 + $0x28] sm:$0xff]
  %v215 = vld [vmem:[%s3 + $0x30] sm:$0x3]
  %v216 = vld [vmem:[%s4] sm:$0xff]
  %v217 = vld [vmem:[%s4 + $0x8] sm:$0xff]
  %v218 = vld [vmem:[%s4 + $0x10] sm:$0xff]
  %v219 = vld [vmem:[%s4 + $0x18] sm:$0xff]
  %v220 = vld [vmem:[%s4 + $0x20] sm:$0xff]
  %v221 = vld [vmem:[%s4 + $0x28] sm:$0xff]
  %v222 = vld [vmem:[%s4 + $0x30] sm:$0x3]
  %224 = vset.pattern.permute.xlu0 0
  %225 = vperm.xlu0 %224, %v216
  %v226 = vpop.permute.xlu0 %225
  %229 = vset.pattern.permute.xlu0 0
  %230 = vperm.xlu0 %229, %v217
  %v231 = vpop.permute.xlu0 %230
  %234 = vset.pattern.permute.xlu0 0
  %235 = vperm.xlu0 %234, %v218
  %v236 = vpop.permute.xlu0 %235
  %239 = vset.pattern.permute.xlu0 0
  %240 = vperm.xlu0 %239, %v219
  %v241 = vpop.permute.xlu0 %240
  %244 = vset.pattern.permute.xlu0 0
  %245 = vperm.xlu0 %244, %v220
  %v246 = vpop.permute.xlu0 %245
  %249 = vset.pattern.permute.xlu0 0
  %250 = vperm.xlu0 %249, %v221
  %v251 = vpop.permute.xlu0 %250
  %254 = vset.pattern.permute.xlu0 0
  %255 = vperm.xlu0 %254, %v222
  %v256 = vpop.permute.xlu0 %255
  %vm258 = vcmask 408576
  %v260 = vsel %vm258, %v209, 0
  %v263 = vsel %vm258, %v210, 0
  %v266 = vsel %vm258, %v211, 0
  %v269 = vsel %vm258, %v212, 0
  %v272 = vsel %vm258, %v213, 0
  %v275 = vsel %vm258, %v214, 0
  %v278 = vsel %vm258, %v215, 0
  %vm280 = vcmask 1041408
  %v282 = vsel %vm280, %v208, 0
  %284 = vmatprep.subr.mxu0 0.0
  %285 = vmatpush1.msra.mxu0 0.0
  %286 = vmatprep.subr.mxu0 0.0
  %287 = vmatpush1.msra.mxu0 0.0
  %288 = vmatprep.subr.mxu0 0.0
  %289 = vmatpush1.msra.mxu0 0.0
  %290 = vmatprep.subr.mxu0 0.0
  %291 = vmatpush1.msra.mxu0 0.0
  %292 = vmatprep.subr.mxu0 0.0
  %293 = vmatpush1.msra.mxu0 0.0
  %294 = vmatprep.subr.mxu0 0.0
  %295 = vmatpush1.msra.mxu0 0.0
  %296 = vmatprep.subr.mxu0 0.0
  %297 = vmatpush1.msra.mxu0 0.0
  %298 = vmatprep.subr.mxu0 0.0
  %299 = vmatpush1.msra.mxu0 0.0
  %300 = vmatprep.subr.mxu0 0.0
  %301 = vmatpush1.msra.mxu0 0.0
  %302 = vmatprep.subr.mxu0 0.0
  %303 = vmatpush1.msra.mxu0 %v282
  %304 = vmatprep.subr.mxu0 0.0
  %305 = vmatpush1.msra.mxu0 %v207
  %306 = vmatprep.subr.mxu0 0.0
  %307 = vmatpush1.msra.mxu0 %v206
  %308 = vmatprep.subr.mxu0 0.0
  %309 = vmatpush1.msra.mxu0 %v205
  %310 = vmatprep.subr.mxu0 0.0
  %311 = vmatpush1.msra.mxu0 %v204
  %312 = vmatprep.subr.mxu0 0.0
  %313 = vmatpush1.msra.mxu0 %v203
  %314 = vmatprep.subr.mxu0 0.0
  %315 = vmatpush1.msra.mxu0 %v202
  %316 = vmatprep.subr.mxu0 0.0
  %317 = vmatpush2.msra.mxu0 0.0
  %318 = vmatprep.subr.mxu0 0.0
  %319 = vmatpush2.msra.mxu0 0.0
  %320 = vmatprep.subr.mxu0 0.0
  %321 = vmatpush2.msra.mxu0 0.0
  %322 = vmatprep.subr.mxu0 0.0
  %323 = vmatpush2.msra.mxu0 0.0
  %324 = vmatprep.subr.mxu0 0.0
  %325 = vmatpush2.msra.mxu0 0.0
  %326 = vmatprep.subr.mxu0 0.0
  %327 = vmatpush2.msra.mxu0 0.0
  %328 = vmatprep.subr.mxu0 0.0
  %329 = vmatpush2.msra.mxu0 0.0
  %330 = vmatprep.subr.mxu0 0.0
  %331 = vmatpush2.msra.mxu0 0.0
  %332 = vmatprep.subr.mxu0 0.0
  %333 = vmatpush2.msra.mxu0 0.0
  %334 = vmatprep.subr.mxu0 0.0
  %335 = vmatpush2.msra.mxu0 0.0
  %336 = vmatprep.subr.mxu0 0.0
  %337 = vmatpush2.msra.mxu0 0.0
  %338 = vmatprep.subr.mxu0 0.0
  %339 = vmatpush2.msra.mxu0 0.0
  %340 = vmatprep.subr.mxu0 0.0
  %341 = vmatpush2.msra.mxu0 0.0
  %342 = vmatprep.subr.mxu0 0.0
  %343 = vmatpush2.msra.mxu0 0.0
  %344 = vmatprep.subr.mxu0 0.0
  %345 = vmatpush2.msra.mxu0 0.0
  %346 = vmatprep.subr.mxu0 0.0
  %347 = vmatpush2.msra.mxu0 0.0
  %348 = vmatprep.mubr.f32.mxu0 0.0
  %349 = vmatmul.mubr.f32.gmra.mxu0 %v260
  %v350 = vpop.f32.mrf.mxu0
  %v351 = vadd.f32 %v226, %v350
  %v352 = vpop.f32.mrf.mxu0
  %353 = vmatprep.mubr.f32.mxu0 0.0
  %354 = vmatmul.mubr.f32.gmra.mxu0 %v263
  %v355 = vpop.f32.mrf.mxu0
  %v356 = vadd.f32 %v231, %v355
  %v357 = vpop.f32.mrf.mxu0
  %358 = vmatprep.mubr.f32.mxu0 0.0
  %359 = vmatmul.mubr.f32.gmra.mxu0 %v266
  %v360 = vpop.f32.mrf.mxu0
  %v361 = vadd.f32 %v236, %v360
  %v362 = vpop.f32.mrf.mxu0
  %363 = vmatprep.mubr.f32.mxu0 0.0
  %364 = vmatmul.mubr.f32.gmra.mxu0 %v269
  %v365 = vpop.f32.mrf.mxu0
  %v366 = vadd.f32 %v241, %v365
  %v367 = vpop.f32.mrf.mxu0
  %368 = vmatprep.mubr.f32.mxu0 0.0
  %369 = vmatmul.mubr.f32.gmra.mxu0 %v272
  %v370 = vpop.f32.mrf.mxu0
  %v371 = vadd.f32 %v246, %v370
  %v372 = vpop.f32.mrf.mxu0
  %373 = vmatprep.mubr.f32.mxu0 0.0
  %374 = vmatmul.mubr.f32.gmra.mxu0 %v275
  %v375 = vpop.f32.mrf.mxu0
  %v376 = vadd.f32 %v251, %v375
  %v377 = vpop.f32.mrf.mxu0
  %378 = vmatprep.mubr.f32.mxu0 0.0
  %379 = vmatmul.mubr.f32.gmra.mxu0 %v278
  %v380 = vpop.f32.mrf.mxu0
  %v381 = vadd.f32 %v256, %v380
  %v382 = vpop.f32.mrf.mxu0
  %383 = vdwg.mxu0
  %v384 = vtanh.pop %v351
  %v385 = vtanh.pop %v356
  %v386 = vtanh.pop %v361
  %v387 = vtanh.pop %v366
  %v388 = vtanh.pop %v371
  %v389 = vtanh.pop %v376
  %v390 = vtanh.pop %v381
  %v391 = vld [vmem:[%s5] sm:$0xff]
  %v392 = vld [vmem:[%s5 + $0x8] sm:$0xff]
  %v393 = vld [vmem:[%s5 + $0x10] sm:$0xff]
  %v394 = vld [vmem:[%s5 + $0x18] sm:$0xff]
  %v395 = vld [vmem:[%s6] sm:$0xff]
  %v396 = vld [vmem:[%s6 + $0x8] sm:$0xff]
  %v397 = vld [vmem:[%s6 + $0x10] sm:$0xff]
  %v398 = vld [vmem:[%s6 + $0x18] sm:$0xff]
  %400 = vset.pattern.permute.xlu0 0
  %401 = vperm.xlu0 %400, %v395
  %v402 = vpop.permute.xlu0 %401
  %405 = vset.pattern.permute.xlu0 0
  %406 = vperm.xlu0 %405, %v396
  %v407 = vpop.permute.xlu0 %406
  %410 = vset.pattern.permute.xlu0 0
  %411 = vperm.xlu0 %410, %v397
  %v412 = vpop.permute.xlu0 %411
  %415 = vset.pattern.permute.xlu0 0
  %416 = vperm.xlu0 %415, %v398
  %v417 = vpop.permute.xlu0 %416
  %v420 = vsel %vm258, %v391, 0
  %v423 = vsel %vm258, %v392, 0
  %v426 = vsel %vm258, %v393, 0
  %v429 = vsel %vm258, %v394, 0
  %v432 = vsel %vm280, %v390, 0
  %434 = vmatprep.subr.mxu0 0.0
  %435 = vmatpush1.msra.mxu0 0.0
  %436 = vmatprep.subr.mxu0 0.0
  %437 = vmatpush1.msra.mxu0 0.0
  %438 = vmatprep.subr.mxu0 0.0
  %439 = vmatpush1.msra.mxu0 0.0
  %440 = vmatprep.subr.mxu0 0.0
  %441 = vmatpush1.msra.mxu0 0.0
  %442 = vmatprep.subr.mxu0 0.0
  %443 = vmatpush1.msra.mxu0 0.0
  %444 = vmatprep.subr.mxu0 0.0
  %445 = vmatpush1.msra.mxu0 0.0
  %446 = vmatprep.subr.mxu0 0.0
  %447 = vmatpush1.msra.mxu0 0.0
  %448 = vmatprep.subr.mxu0 0.0
  %449 = vmatpush1.msra.mxu0 0.0
  %450 = vmatprep.subr.mxu0 0.0
  %451 = vmatpush1.msra.mxu0 0.0
  %452 = vmatprep.subr.mxu0 0.0
  %453 = vmatpush1.msra.mxu0 %v432
  %454 = vmatprep.subr.mxu0 0.0
  %455 = vmatpush1.msra.mxu0 %v389
  %456 = vmatprep.subr.mxu0 0.0
  %457 = vmatpush1.msra.mxu0 %v388
  %458 = vmatprep.subr.mxu0 0.0
  %459 = vmatpush1.msra.mxu0 %v387
  %460 = vmatprep.subr.mxu0 0.0
  %461 = vmatpush1.msra.mxu0 %v386
  %462 = vmatprep.subr.mxu0 0.0
  %463 = vmatpush1.msra.mxu0 %v385
  %464 = vmatprep.subr.mxu0 0.0
  %465 = vmatpush1.msra.mxu0 %v384
  %466 = vmatprep.subr.mxu0 0.0
  %467 = vmatpush2.msra.mxu0 0.0
  %468 = vmatprep.subr.mxu0 0.0
  %469 = vmatpush2.msra.mxu0 0.0
  %470 = vmatprep.subr.mxu0 0.0
  %471 = vmatpush2.msra.mxu0 0.0
  %472 = vmatprep.subr.mxu0 0.0
  %473 = vmatpush2.msra.mxu0 0.0
  %474 = vmatprep.subr.mxu0 0.0
  %475 = vmatpush2.msra.mxu0 0.0
  %476 = vmatprep.subr.mxu0 0.0
  %477 = vmatpush2.msra.mxu0 0.0
  %478 = vmatprep.subr.mxu0 0.0
  %479 = vmatpush2.msra.mxu0 0.0
  %480 = vmatprep.subr.mxu0 0.0
  %481 = vmatpush2.msra.mxu0 0.0
  %482 = vmatprep.subr.mxu0 0.0
  %483 = vmatpush2.msra.mxu0 0.0
  %484 = vmatprep.subr.mxu0 0.0
  %485 = vmatpush2.msra.mxu0 0.0
  %486 = vmatprep.subr.mxu0 0.0
  %487 = vmatpush2.msra.mxu0 0.0
  %488 = vmatprep.subr.mxu0 0.0
  %489 = vmatpush2.msra.mxu0 0.0
  %490 = vmatprep.subr.mxu0 0.0
  %491 = vmatpush2.msra.mxu0 0.0
  %492 = vmatprep.subr.mxu0 0.0
  %493 = vmatpush2.msra.mxu0 0.0
  %494 = vmatprep.subr.mxu0 0.0
  %495 = vmatpush2.msra.mxu0 0.0
  %496 = vmatprep.subr.mxu0 0.0
  %497 = vmatpush2.msra.mxu0 0.0
  %498 = vmatprep.mubr.f32.mxu0 0.0
  %499 = vmatmul.mubr.f32.gmra.mxu0 %v420
  %v500 = vpop.f32.mrf.mxu0
  %v501 = vadd.f32 %v402, %v500
  %v502 = vpop.f32.mrf.mxu0
  %503 = vmatprep.mubr.f32.mxu0 0.0
  %504 = vmatmul.mubr.f32.gmra.mxu0 %v423
  %v505 = vpop.f32.mrf.mxu0
  %v506 = vadd.f32 %v407, %v505
  %v507 = vpop.f32.mrf.mxu0
  %508 = vmatprep.mubr.f32.mxu0 0.0
  %509 = vmatmul.mubr.f32.gmra.mxu0 %v426
  %v510 = vpop.f32.mrf.mxu0
  %v511 = vadd.f32 %v412, %v510
  %v512 = vpop.f32.mrf.mxu0
  %513 = vmatprep.mubr.f32.mxu0 0.0
  %514 = vmatmul.mubr.f32.gmra.mxu0 %v429
  %v515 = vpop.f32.mrf.mxu0
  %v516 = vadd.f32 %v417, %v515
  %v517 = vpop.f32.mrf.mxu0
  %518 = vdwg.mxu0
  %v519 = vtanh.pop %v501
  %v520 = vtanh.pop %v506
  %v521 = vtanh.pop %v511
  %v522 = vtanh.pop %v516
  %vm523 = vcmask 64512
  %524 = vst.msk [vmem:[%s7] sm:$0xff] %vm523, %v519
  %525 = vst.msk [vmem:[%s7 + $0x8] sm:$0xff] %vm523, %v520
  %526 = vst.msk [vmem:[%s7 + $0x10] sm:$0xff] %vm523, %v521
  %527 = vst.msk [vmem:[%s7 + $0x18] sm:$0xff] %vm523, %v522
  // Predicated region
  $region30: #{tpu_custom_call.1} parent=0 // pred_check
    _
  $region31: #{tpu_custom_call.1} parent=0 // pred_check_branch
    %529 = sbr.rel (0) target = $region33
  $region32: #{tpu_custom_call.1} parent=0 // pred_region
    _
  $region33: #{tpu_custom_call.1} parent=0 // pred_fallthru
    _
  // Predicated region
  $region34: #{tpu_custom_call.1} parent=0 // pred_check
    _
  $region35: #{tpu_custom_call.1} parent=0 // pred_check_branch
    %531 = sbr.rel (0) target = $region37
  $region36: #{tpu_custom_call.1} parent=0 // pred_region
    _
  $region37: #{tpu_custom_call.1} parent=0 // pred_fallthru
    _

</llo_original>
